<compile_context>
chip_gen: v6e
topology: v6e:2x2x1
jax: 0.10.0
libtpu: 0.0.40
codegen_flags: <defaults>
</compile_context>

<pallas_src>
import jax
import jax.numpy as jnp
from jax.experimental import pallas as pl
from jax.experimental.pallas import tpu as pltpu


def _round_up(x, m):
    return (x + m - 1) // m * m


def _encoder_kernel(self_ref, mask_ref, feats_ref, invc_ref, w_t_ref,
                    out_ref, neigh_acc):
    """Grid = (batch_tiles, node_tiles); node axis (k) is the reduction axis.

    self_ref : [tb, F]   bf16  self features for this batch tile
    mask_ref : [tb, tn]  bf16  exact 0/1 unique-neighbor mask tile
    feats_ref: [tn, F]   bf16  node-feature-table tile
    invc_ref : [tb, 1]   f32   exact 1/|unique neighbors| (0 for padded rows)
    w_t_ref  : [2F, E]   bf16  pre-transposed weight (MXU-stationary)
    out_ref  : [tb, E]   f32   lane-dense output tile
    neigh_acc: [tb, F]   f32   VMEM accumulator for mask @ features
    """
    k = pl.program_id(1)

    @pl.when(k == 0)
    def _init():
        neigh_acc[...] = jnp.zeros_like(neigh_acc)

    # Partial neighbor-feature sum for this node tile (bf16 in, f32 acc).
    neigh_acc[...] += jnp.dot(mask_ref[...], feats_ref[...],
                              preferred_element_type=jnp.float32)

    @pl.when(k == pl.num_programs(1) - 1)
    def _finalize():
        w_t = w_t_ref[...]                               # [2F, E] bf16
        # Exact f32 mean scale (1/count precomputed in f32 by the wrapper;
        # lands on the VPU, MXU still sees bf16 operands).
        neigh = neigh_acc[...] * invc_ref[...]           # [tb, F] f32
        # Single merged projection: relu(W @ combined.T).T
        #   == relu(cat([self, neigh], 1) @ W.T)          -> [tb, E]
        combined = jnp.concatenate(
            [self_ref[...].astype(jnp.float32), neigh], axis=1)
        acc = jnp.dot(combined.astype(w_t.dtype), w_t,
                      preferred_element_type=jnp.float32)
        out_ref[...] = jnp.maximum(acc, 0.0)


def encoder_forward(self_feats, nbr_mask, inv_counts, features, weight,
                    *, tb=None, tn=None):
    """self_feats: [B, F], nbr_mask: [B, N] exact 0/1 unique-neighbor mask,
    inv_counts: [B, 1] f32 (= 1/|unique neighbors|), features: [N, F],
    weight: [E, 2F].  Returns [E, B], matching the torch module's layout."""
    B, F = self_feats.shape
    N, F2 = features.shape
    E = weight.shape[0]
    assert F2 == F and weight.shape[1] == 2 * F
    assert nbr_mask.shape == (B, N) and inv_counts.shape == (B, 1)

    # ---- generation-aware tile selection -----------------------------------
    # tb: full batch when small (<= 256), otherwise 256 (keeps >= 2 batch
    # tiles for v7x's second TensorCore once B > 256).
    if tb is None:
        tb = min(_round_up(B, 8), 256)
    Bp = _round_up(B, tb)
    # tn: full node table when small, else 4096 (256-multiples).
    if tn is None:
        tn = min(_round_up(N, 256), 4096)
    Np = _round_up(N, tn)

    # bf16 operands (0/1 mask values are exact in bf16); f32 accumulation.
    self_p = jnp.pad(self_feats.astype(jnp.bfloat16), ((0, Bp - B), (0, 0)))
    mask_p = jnp.pad(nbr_mask.astype(jnp.bfloat16),
                     ((0, Bp - B), (0, Np - N)))
    feats_p = jnp.pad(features.astype(jnp.bfloat16), ((0, Np - N), (0, 0)))
    invc_p = jnp.pad(inv_counts.astype(jnp.float32), ((0, Bp - B), (0, 0)))
    # Pre-transposed weight: kernel never transposes an activation tile and
    # the output is [tb, E] with E on the lane axis (unmasked stores).
    w_t = weight.T.astype(jnp.bfloat16)                    # [2F, E]

    n_batch_tiles = Bp // tb
    flops = 2 * Bp * Np * F + 2 * Bp * (2 * F) * E
    # Feature table streams once per batch tile (re-streaming accounted for).
    bytes_accessed = (2 * self_p.size + 2 * mask_p.size + 4 * invc_p.size
                      + 2 * n_batch_tiles * feats_p.size + 2 * w_t.size
                      + 4 * Bp * E)

    out_be = pl.pallas_call(
        _encoder_kernel,
        out_shape=jax.ShapeDtypeStruct((Bp, E), jnp.float32),
        grid_spec=pltpu.PrefetchScalarGridSpec(
            num_scalar_prefetch=0,
            grid=(Bp // tb, Np // tn),            # reduction (node) axis last
            in_specs=[
                pl.BlockSpec((tb, F), lambda i, k: (i, 0)),      # self feats
                pl.BlockSpec((tb, tn), lambda i, k: (i, k)),     # 0/1 mask
                pl.BlockSpec((tn, F), lambda i, k: (k, 0)),      # feature tile
                pl.BlockSpec((tb, 1), lambda i, k: (i, 0)),      # 1/count
                pl.BlockSpec((2 * F, E), lambda i, k: (0, 0)),   # weight.T
            ],
            out_specs=pl.BlockSpec((tb, E), lambda i, k: (i, 0)),
            scratch_shapes=[pltpu.VMEM((tb, F), jnp.float32)],
        ),
        compiler_params=pltpu.CompilerParams(
            dimension_semantics=("parallel", "arbitrary"),
            # Above v5e's 16 MiB scoped default, below v7x's 64 MiB physical;
            # the largest tile config (tb=256, tn=4096) needs < 16 MiB even
            # with lane padding and default double buffering, so no custom
            # pl.Buffered depth is required.
            vmem_limit_bytes=48 * 1024 * 1024,
        ),
        cost_estimate=pl.CostEstimate(
            flops=flops, transcendentals=0, bytes_accessed=bytes_accessed),
    )(self_p, mask_p, feats_p, invc_p, w_t)

    # Torch returns [embed_dim, batch]; a single XLA transpose keeps the
    # kernel stores lane-dense (for B < 128 the [B, E=128] layout is denser).
    return out_be[:B].T


def _xavier_uniform(key, shape):
    # torch.nn.init.xavier_uniform for a [fan_out, fan_in] weight
    fan_out, fan_in = shape
    bound = (6.0 / (fan_in + fan_out)) ** 0.5
    return jax.random.uniform(key, shape, jnp.float32, -bound, bound)


if __name__ == "__main__":
    # Small deterministic setup consistent with the module.
    num_nodes = 256    # size of the node-feature table
    feat_dim = 16      # self.feat_dim
    embed_dim = 128    # self.embed_dim
    batch = 32         # len(nodes)
    num_sample = 10    # aggregator sample budget

    key = jax.random.PRNGKey(0)
    k_feat, k_w, k_nbr, k_nodes = jax.random.split(key, 4)

    # Node feature table (the `features` embedding in torch).
    features = jax.random.normal(k_feat, (num_nodes, feat_dim), jnp.float32)

    # Encoder weight [embed_dim, 2*feat_dim] (gcn=False), xavier-uniform init.
    weight = _xavier_uniform(k_w, (embed_dim, 2 * feat_dim))

    # Batch of node ids.
    nodes = jax.random.randint(k_nodes, (batch,), 0, num_nodes)

    # TODO(synk): torch's MeanAggregator samples neighbors with host-side
    # python random.sample over adj_lists; here a deterministic jax.random
    # neighbor-id table stands in, with duplicates collapsed via the 0/1 mask,
    # which preserves the unique-neighbor mean math.
    nbr_ids = jax.random.randint(k_nbr, (batch, num_sample), 0, num_nodes)
    onehot = jax.nn.one_hot(nbr_ids, num_nodes, dtype=jnp.float32)   # [B,S,N]
    nbr_mask = (onehot.sum(axis=1) > 0).astype(jnp.float32)          # [B,N] 0/1
    counts = nbr_mask.sum(axis=1, keepdims=True)                     # >= 1
    inv_counts = 1.0 / counts                                        # exact f32

    # Self-features lookup (embedding gather) — glue in plain JAX.
    self_feats = jnp.take(features, nodes, axis=0)                   # [B, F]

    out = encoder_forward(self_feats, nbr_mask, inv_counts, features, weight)
    out = jax.block_until_ready(out)

    # Reference mirroring the kernel numerics: bf16-rounded features/weight,
    # exact 0/1 mask, exact f32 1/count scale, f32 accumulation.
    f32 = jnp.float32
    feats_r = features.astype(jnp.bfloat16).astype(f32)
    self_r = self_feats.astype(jnp.bfloat16).astype(f32)
    neigh_r = (nbr_mask @ feats_r) * inv_counts
    comb_r = jnp.concatenate([self_r, neigh_r], axis=1)
    comb_r = comb_r.astype(jnp.bfloat16).astype(f32)
    w_t_r = weight.T.astype(jnp.bfloat16).astype(f32)
    ref = jnp.maximum(comb_r @ w_t_r, 0.0).T

    assert out.shape == (embed_dim, batch)
    assert jnp.allclose(out, ref, atol=1e-2, rtol=1e-2), \
        float(jnp.max(jnp.abs(out - ref)))

    print("KERNEL_OK")
</pallas_src>

<mosaic_0001>
module attributes {stable_mosaic.version = 11 : i64} {
  func.func @_encoder_kernel(%arg0: i32, %arg1: i32, %arg2: memref<32x16xbf16, #tpu.memory_space<vmem>>, %arg3: memref<32x256xbf16, #tpu.memory_space<vmem>>, %arg4: memref<256x16xbf16, #tpu.memory_space<vmem>>, %arg5: memref<32x1xf32, #tpu.memory_space<vmem>>, %arg6: memref<32x128xbf16, #tpu.memory_space<vmem>>, %arg7: memref<32x128xf32, #tpu.memory_space<vmem>>, %arg8: memref<32x16xf32, #tpu.memory_space<vmem>>) attributes {dimension_semantics = [#tpu.dimension_semantics<parallel>, #tpu.dimension_semantics<arbitrary>], iteration_bounds = array<i64: 1, 1>, scalar_prefetch = 0 : i64, scratch_operands = 1 : i64, tpu.core_type = #tpu.core_type<tc>, window_params = [{transform_indices = @transform_0, window_bounds = array<i64: 32, 16>}, {transform_indices = @transform_1, window_bounds = array<i64: 32, 256>}, {transform_indices = @transform_2, window_bounds = array<i64: 256, 16>}, {transform_indices = @transform_3, window_bounds = array<i64: 32, 1>}, {pipeline_mode = #tpu.pipeline_mode<synchronous>, transform_indices = @transform_4, window_bounds = array<i64: 32, 128>}, {transform_indices = @transform_5, window_bounds = array<i64: 32, 128>}]} {
    %c0_i32 = arith.constant 0 : i32
    %0 = arith.cmpi eq, %arg1, %c0_i32 : i32
    %1 = arith.extui %0 : i1 to i32
    %c0_i32_0 = arith.constant 0 : i32
    %2 = arith.cmpi ne, %1, %c0_i32_0 : i32
    scf.if %2 {
      %cst_10 = arith.constant 0.000000e+00 : f32
      %12 = vector.broadcast %cst_10 : f32 to vector<32x16xf32>
      %c0_11 = arith.constant 0 : index
      %c0_12 = arith.constant 0 : index
      %13 = vector.load %arg8[%c0_11, %c0_12] : memref<32x16xf32, #tpu.memory_space<vmem>>, vector<32x16xf32>
      tpu.vector_store %arg8[%c0_11, %c0_12], %12 {strides = array<i32>} : memref<32x16xf32, #tpu.memory_space<vmem>>, vector<32x16xf32>,
    } else {
    }
    %c0 = arith.constant 0 : index
    %c0_1 = arith.constant 0 : index
    %3 = vector.load %arg8[%c0, %c0_1] : memref<32x16xf32, #tpu.memory_space<vmem>>, vector<32x16xf32>
    %c0_2 = arith.constant 0 : index
    %c0_3 = arith.constant 0 : index
    %4 = vector.load %arg3[%c0_2, %c0_3] : memref<32x256xbf16, #tpu.memory_space<vmem>>, vector<32x256xbf16>
    %c0_4 = arith.constant 0 : index
    %c0_5 = arith.constant 0 : index
    %5 = vector.load %arg4[%c0_4, %c0_5] : memref<256x16xbf16, #tpu.memory_space<vmem>>, vector<256x16xbf16>
    %cst = arith.constant dense<0.000000e+00> : vector<32x16xf32>
    %6 = tpu.matmul %4, %5, %cst {dimension_numbers = #tpu.dot_dimension_numbers<[1], [0], [0], [1], [0, 0, 1, 1], [], []>} : vector<32x256xbf16>, vector<256x16xbf16>, vector<32x16xf32> -> vector<32x16xf32>
    %7 = arith.addf %3, %6 : vector<32x16xf32>
    %c0_6 = arith.constant 0 : index
    %c0_7 = arith.constant 0 : index
    %8 = vector.load %arg8[%c0_6, %c0_7] : memref<32x16xf32, #tpu.memory_space<vmem>>, vector<32x16xf32>
    tpu.vector_store %arg8[%c0_6, %c0_7], %7 {strides = array<i32>} : memref<32x16xf32, #tpu.memory_space<vmem>>, vector<32x16xf32>,
    %c0_i32_8 = arith.constant 0 : i32
    %9 = arith.cmpi eq, %arg1, %c0_i32_8 : i32
    %10 = arith.extui %9 : i1 to i32
    %c0_i32_9 = arith.constant 0 : i32
    %11 = arith.cmpi ne, %10, %c0_i32_9 : i32
    scf.if %11 {
      %c0_10 = arith.constant 0 : index
      %c0_11 = arith.constant 0 : index
      %12 = vector.load %arg6[%c0_10, %c0_11] : memref<32x128xbf16, #tpu.memory_space<vmem>>, vector<32x128xbf16>
      %c0_12 = arith.constant 0 : index
      %c0_13 = arith.constant 0 : index
      %13 = vector.load %arg8[%c0_12, %c0_13] : memref<32x16xf32, #tpu.memory_space<vmem>>, vector<32x16xf32>
      %c0_14 = arith.constant 0 : index
      %c0_15 = arith.constant 0 : index
      %14 = vector.load %arg5[%c0_14, %c0_15] : memref<32x1xf32, #tpu.memory_space<vmem>>, vector<32x1xf32>
      %15 = vector.broadcast %14 : vector<32x1xf32> to vector<32x16xf32>
      %16 = arith.mulf %13, %15 : vector<32x16xf32>
      %c0_16 = arith.constant 0 : index
      %c0_17 = arith.constant 0 : index
      %17 = vector.load %arg2[%c0_16, %c0_17] : memref<32x16xbf16, #tpu.memory_space<vmem>>, vector<32x16xbf16>
      %18 = arith.extf %17 : vector<32x16xbf16> to vector<32x16xf32>
      %19 = tpu.concatenate %18, %16 in 1 : vector<32x16xf32>, vector<32x16xf32> -> vector<32x32xf32>
      %20 = arith.truncf %19 : vector<32x32xf32> to vector<32x32xbf16>
      %cst_18 = arith.constant dense<0.000000e+00> : vector<32x128xf32>
      %21 = tpu.matmul %20, %12, %cst_18 {dimension_numbers = #tpu.dot_dimension_numbers<[1], [0], [0], [1], [0, 0, 1, 1], [], []>} : vector<32x32xbf16>, vector<32x128xbf16>, vector<32x128xf32> -> vector<32x128xf32>
      %cst_19 = arith.constant 0.000000e+00 : f32
      %22 = vector.broadcast %cst_19 : f32 to vector<32x128xf32>
      %23 = arith.maximumf %21, %22 : vector<32x128xf32>
      %c0_20 = arith.constant 0 : index
      %c0_21 = arith.constant 0 : index
      %24 = vector.load %arg7[%c0_20, %c0_21] : memref<32x128xf32, #tpu.memory_space<vmem>>, vector<32x128xf32>
      tpu.vector_store %arg7[%c0_20, %c0_21], %23 {strides = array<i32>} : memref<32x128xf32, #tpu.memory_space<vmem>>, vector<32x128xf32>,
    } else {
    }
    return
  }
  func.func @transform_0(%arg0: i32, %arg1: i32) -> (i32, i32) {
    %c0_i32 = arith.constant 0 : i32
    %c0_i32_0 = arith.constant 0 : i32
    return %arg0, %c0_i32 : i32, i32
  }
  func.func @transform_1(%arg0: i32, %arg1: i32) -> (i32, i32) {
    %c0_i32 = arith.constant 0 : i32
    return %arg0, %arg1 : i32, i32
  }
  func.func @transform_2(%arg0: i32, %arg1: i32) -> (i32, i32) {
    %c0_i32 = arith.constant 0 : i32
    %c0_i32_0 = arith.constant 0 : i32
    return %arg1, %c0_i32 : i32, i32
  }
  func.func @transform_3(%arg0: i32, %arg1: i32) -> (i32, i32) {
    %c0_i32 = arith.constant 0 : i32
    %c0_i32_0 = arith.constant 0 : i32
    return %arg0, %c0_i32 : i32, i32
  }
  func.func @transform_4(%arg0: i32, %arg1: i32) -> (i32, i32) {
    %c0_i32 = arith.constant 0 : i32
    %c0_i32_0 = arith.constant 0 : i32
    %c0_i32_1 = arith.constant 0 : i32
    return %c0_i32, %c0_i32_0 : i32, i32
  }
  func.func @transform_5(%arg0: i32, %arg1: i32) -> (i32, i32) {
    %c0_i32 = arith.constant 0 : i32
    %c0_i32_0 = arith.constant 0 : i32
    return %arg0, %c0_i32 : i32, i32
  }
}

</mosaic_0001>

<llo_original>
// kernel: tpu_custom_call.1
$region0: #{tpu_custom_call.1}
  #allocation0 [shape = 'u32[]', space=smem, size = 0x4, offset = 0x4, fixed_abs, tag = 'smem constant byte address 0x4 - core index']
  #allocation1 [shape = 'u32[144,128]{1,0:T(1,128)}', space=vmem, size = 0x12000, scoped, tag = 'internal scratch']
  #allocation2 [shape = 'f32[32,16]{1,0:T(8,128)}', space=vmem, size = 0x4000, scoped, tag = 'scratch operand']
  %s0 = inlined_call_operand.vmem [shape: bf16[32,16], index: 0, kind: input, shape index: {}]
  %s1 = inlined_call_operand.vmem [shape: bf16[32,256], index: 1, kind: input, shape index: {}]
  %s2 = inlined_call_operand.vmem [shape: bf16[256,16], index: 2, kind: input, shape index: {}]
  %s3 = inlined_call_operand.vmem [shape: f32[32,1], index: 3, kind: input, shape index: {}]
  %s4 = inlined_call_operand.vmem [shape: bf16[32,128], index: 4, kind: input, shape index: {}]
  %s5 = inlined_call_operand.hbm [shape: f32[32,128], index: 5, kind: output, shape index: {}]
  %s6 = sld [smem:[#allocation0]]
  $region38: #{tpu_custom_call.1} parent=0
    _
  %s8 = ssub.s32 1, %s6
  %s9 = scalar_select 0, %s8, %s6
  $region1: #{tpu_custom_call.1} parent=0
    #allocation3 [shape = 'u8[16384]{0}', space=vmem, size = 0x4000, scoped, tag = 'output window, operand 0, single buffered']
    #allocation4 [shape = 's32[1]{0}', space=sflag, size = 0x4, scoped, tag = 'scoped memory for tpu_custom_call.1']
    %10 = vsyncpa [#allocation4], 0
    // Predicated region
    $region2: #{tpu_custom_call.1} parent=1 // pred_check
      _
    $region3: #{tpu_custom_call.1} parent=1 // pred_check_branch
      %12 = sbr.rel (0) target = $region5
    $region4: #{tpu_custom_call.1} parent=1 // pred_region
      _
    $region5: #{tpu_custom_call.1} parent=1 // pred_fallthru
      _
    // Predicated region
    $region6: #{tpu_custom_call.1} parent=1 // pred_check
      _
    $region7: #{tpu_custom_call.1} parent=1 // pred_check_branch
      %14 = sbr.rel (0) target = $region9
    $region8: #{tpu_custom_call.1} parent=1 // pred_region
      _
    $region9: #{tpu_custom_call.1} parent=1 // pred_fallthru
      _
    // Predicated region
    $region10: #{tpu_custom_call.1} parent=1 // pred_check
      _
    $region11: #{tpu_custom_call.1} parent=1 // pred_check_branch
      %16 = sbr.rel (0) target = $region13
    $region12: #{tpu_custom_call.1} parent=1 // pred_region
      _
    $region13: #{tpu_custom_call.1} parent=1 // pred_fallthru
      _
    // Predicated region
    $region14: #{tpu_custom_call.1} parent=1 // pred_check
      _
    $region15: #{tpu_custom_call.1} parent=1 // pred_check_branch
      %18 = sbr.rel (0) target = $region17
    $region16: #{tpu_custom_call.1} parent=1 // pred_region
      _
    $region17: #{tpu_custom_call.1} parent=1 // pred_fallthru
      _
    // Predicated region
    $region18: #{tpu_custom_call.1} parent=1 // pred_check
      _
    $region19: #{tpu_custom_call.1} parent=1 // pred_check_branch
      %20 = sbr.rel (0) target = $region21
    $region20: #{tpu_custom_call.1} parent=1 // pred_region
      _
    $region21: #{tpu_custom_call.1} parent=1 // pred_fallthru
      _
    %p22 = scmp.eq.s32.totalorder 0, 0
    // Predicated region
    $region22: #{tpu_custom_call.1} parent=1 // pred_check
      %p23 = pneg %p22
    $region23: #{tpu_custom_call.1} parent=1 // pred_check_branch
      %25 = sbr.rel (%p23) target = $region25
    $region24: #{tpu_custom_call.1} parent=1 // pred_region
      %vm26 = vcmask 130048
      %27 = vst.msk [vmem:[#allocation2] sm:$0xff] %vm26, 0.0
      %28 = vst.msk [vmem:[#allocation2 + $0x8] sm:$0xff] %vm26, 0.0
      %29 = vst.msk [vmem:[#allocation2 + $0x10] sm:$0xff] %vm26, 0.0
      %30 = vst.msk [vmem:[#allocation2 + $0x18] sm:$0xff] %vm26, 0.0
    $region25: #{tpu_custom_call.1} parent=1 // pred_fallthru
      _
    %v31 = vld [vmem:[#allocation2] sm:$0xff]
    %v32 = vld [vmem:[#allocation2 + $0x8] sm:$0xff]
    %v33 = vld [vmem:[#allocation2 + $0x10] sm:$0xff]
    %v34 = vld [vmem:[#allocation2 + $0x18] sm:$0xff]
    %v35 = vld [vmem:[%s1] sm:$0xff]
    %v36 = vld [vmem:[%s1 + $0x8] sm:$0xff]
    %v37 = vld [vmem:[%s1 + $0x10] sm:$0xff]
    %v38 = vld [vmem:[%s1 + $0x18] sm:$0xff]
    %v39 = vld [vmem:[%s2] sm:$0xf]
    %v40 = vld [vmem:[%s2 + $0x4] sm:$0xf]
    %v41 = vld [vmem:[%s2 + $0x8] sm:$0xf]
    %v42 = vld [vmem:[%s2 + $0xc] sm:$0xf]
    %v43 = vld [vmem:[%s2 + $0x10] sm:$0xf]
    %v44 = vld [vmem:[%s2 + $0x14] sm:$0xf]
    %v45 = vld [vmem:[%s2 + $0x18] sm:$0xf]
    %v46 = vld [vmem:[%s2 + $0x1c] sm:$0xf]
    %v47 = vld [vmem:[%s2 + $0x20] sm:$0xf]
    %v48 = vld [vmem:[%s2 + $0x24] sm:$0xf]
    %v49 = vld [vmem:[%s2 + $0x28] sm:$0xf]
    %v50 = vld [vmem:[%s2 + $0x2c] sm:$0xf]
    %v51 = vld [vmem:[%s2 + $0x30] sm:$0xf]
    %v52 = vld [vmem:[%s2 + $0x34] sm:$0xf]
    %v53 = vld [vmem:[%s2 + $0x38] sm:$0xf]
    %v54 = vld [vmem:[%s2 + $0x3c] sm:$0xf]
    %v55 = vld [vmem:[%s2 + $0x40] sm:$0xf]
    %v56 = vld [vmem:[%s2 + $0x44] sm:$0xf]
    %v57 = vld [vmem:[%s2 + $0x48] sm:$0xf]
    %v58 = vld [vmem:[%s2 + $0x4c] sm:$0xf]
    %v59 = vld [vmem:[%s2 + $0x50] sm:$0xf]
    %v60 = vld [vmem:[%s2 + $0x54] sm:$0xf]
    %v61 = vld [vmem:[%s2 + $0x58] sm:$0xf]
    %v62 = vld [vmem:[%s2 + $0x5c] sm:$0xf]
    %v63 = vld [vmem:[%s2 + $0x60] sm:$0xf]
    %v64 = vld [vmem:[%s2 + $0x64] sm:$0xf]
    %v65 = vld [vmem:[%s2 + $0x68] sm:$0xf]
    %v66 = vld [vmem:[%s2 + $0x6c] sm:$0xf]
    %v67 = vld [vmem:[%s2 + $0x70] sm:$0xf]
    %v68 = vld [vmem:[%s2 + $0x74] sm:$0xf]
    %v69 = vld [vmem:[%s2 + $0x78] sm:$0xf]
    %v70 = vld [vmem:[%s2 + $0x7c] sm:$0xf]
    %v75 = vunpack.c.l.b16 %v35
    %v76 = vunpack.c.h.b16 %v35
    %v77 = vunpack.c.l.b16 %v36
    %v78 = vunpack.c.h.b16 %v36
    %v79 = vunpack.c.l.b16 %v37
    %v80 = vunpack.c.h.b16 %v37
    %v81 = vunpack.c.l.b16 %v38
    %v82 = vunpack.c.h.b16 %v38
    %v83 = vpack.c.b16 %v77, %v75
    %v84 = vpack.c.b16 %v78, %v76
    %v85 = vpack.c.b16 %v81, %v79
    %v86 = vpack.c.b16 %v82, %v80
    %v123 = vunpack.c.l.b16 %v39
    %v124 = vunpack.c.l.b16 %v40
    %v125 = vunpack.c.l.b16 %v41
    %v126 = vunpack.c.l.b16 %v42
    %v127 = vunpack.c.l.b16 %v43
    %v128 = vunpack.c.l.b16 %v44
    %v129 = vunpack.c.l.b16 %v45
    %v130 = vunpack.c.l.b16 %v46
    %v131 = vunpack.c.l.b16 %v47
    %v132 = vunpack.c.l.b16 %v48
    %v133 = vunpack.c.l.b16 %v49
    %v134 = vunpack.c.l.b16 %v50
    %v135 = vunpack.c.l.b16 %v51
    %v136 = vunpack.c.l.b16 %v52
    %v137 = vunpack.c.l.b16 %v53
    %v138 = vunpack.c.l.b16 %v54
    %v139 = vunpack.c.l.b16 %v55
    %v140 = vunpack.c.l.b16 %v56
    %v141 = vunpack.c.l.b16 %v57
    %v142 = vunpack.c.l.b16 %v58
    %v143 = vunpack.c.l.b16 %v59
    %v144 = vunpack.c.l.b16 %v60
    %v145 = vunpack.c.l.b16 %v61
    %v146 = vunpack.c.l.b16 %v62
    %v147 = vunpack.c.l.b16 %v63
    %v148 = vunpack.c.l.b16 %v64
    %v149 = vunpack.c.l.b16 %v65
    %v150 = vunpack.c.l.b16 %v66
    %v151 = vunpack.c.l.b16 %v67
    %v152 = vunpack.c.l.b16 %v68
    %v153 = vunpack.c.l.b16 %v69
    %v154 = vunpack.c.l.b16 %v70
    %v155 = vpack.c.b16 %v124, %v123
    %v156 = vpack.c.b16 %v126, %v125
    %v157 = vpack.c.b16 %v128, %v127
    %v158 = vpack.c.b16 %v130, %v129
    %v159 = vpack.c.b16 %v132, %v131
    %v160 = vpack.c.b16 %v134, %v133
    %v161 = vpack.c.b16 %v136, %v135
    %v162 = vpack.c.b16 %v138, %v137
    %v163 = vpack.c.b16 %v140, %v139
    %v164 = vpack.c.b16 %v142, %v141
    %v165 = vpack.c.b16 %v144, %v143
    %v166 = vpack.c.b16 %v146, %v145
    %v167 = vpack.c.b16 %v148, %v147
    %v168 = vpack.c.b16 %v150, %v149
    %v169 = vpack.c.b16 %v152, %v151
    %v170 = vpack.c.b16 %v154, %v153
    %187 = vmatprep.subr.bf16.mxu0 0
    %188 = vmatpush1.bf16.msra.mxu0 %v162
    %189 = vmatprep.subr.bf16.mxu0 0
    %190 = vmatpush1.bf16.msra.mxu0 %v161
    %191 = vmatprep.subr.bf16.mxu0 0
    %192 = vmatpush1.bf16.msra.mxu0 %v160
    %193 = vmatprep.subr.bf16.mxu0 0
    %194 = vmatpush1.bf16.msra.mxu0 %v159
    %195 = vmatprep.subr.bf16.mxu0 0
    %196 = vmatpush1.bf16.msra.mxu0 %v158
    %197 = vmatprep.subr.bf16.mxu0 0
    %198 = vmatpush1.bf16.msra.mxu0 %v157
    %199 = vmatprep.subr.bf16.mxu0 0
    %200 = vmatpush1.bf16.msra.mxu0 %v156
    %201 = vmatprep.subr.bf16.mxu0 0
    %202 = vmatpush1.bf16.msra.mxu0 %v155
    %203 = vmatprep.subr.bf16.mxu0 0
    %204 = vmatpush2.bf16.msra.mxu0 %v170
    %205 = vmatprep.subr.bf16.mxu0 0
    %206 = vmatpush2.bf16.msra.mxu0 %v169
    %207 = vmatprep.subr.bf16.mxu0 0
    %208 = vmatpush2.bf16.msra.mxu0 %v168
    %209 = vmatprep.subr.bf16.mxu0 0
    %210 = vmatpush2.bf16.msra.mxu0 %v167
    %211 = vmatprep.subr.bf16.mxu0 0
    %212 = vmatpush2.bf16.msra.mxu0 %v166
    %213 = vmatprep.subr.bf16.mxu0 0
    %214 = vmatpush2.bf16.msra.mxu0 %v165
    %215 = vmatprep.subr.bf16.mxu0 0
    %216 = vmatpush2.bf16.msra.mxu0 %v164
    %217 = vmatprep.subr.bf16.mxu0 0
    %218 = vmatpush2.bf16.msra.mxu0 %v163
    %219 = vmatprep.mubr.bf16.mxu0 %v84
    %220 = vmatmul.mubr.bf16.gmra.mxu0 %v83
    %v221 = vpop.f32.mrf.mxu0
    %v222 = vadd.f32 0.0, %v221
    %v223 = vpop.f32.mrf.mxu0
    %v224 = vpop.f32.mrf.mxu0
    %v225 = vadd.f32 0.0, %v224
    %v226 = vpop.f32.mrf.mxu0
    %227 = vmatprep.mubr.bf16.mxu0 %v86
    %228 = vmatmul.mubr.bf16.gmra.mxu0 %v85
    %v229 = vpop.f32.mrf.mxu0
    %v230 = vadd.f32 0.0, %v229
    %v231 = vpop.f32.mrf.mxu0
    %v232 = vpop.f32.mrf.mxu0
    %v233 = vadd.f32 0.0, %v232
    %v234 = vpop.f32.mrf.mxu0
    %235 = vdwg.mxu0
    %v236 = vadd.f32 %v31, %v222
    %v237 = vadd.f32 %v32, %v225
    %v238 = vadd.f32 %v33, %v230
    %v239 = vadd.f32 %v34, %v233
    %vm240 = vcmask 130048
    %241 = vst.msk [vmem:[#allocation2] sm:$0xff] %vm240, %v236
    %242 = vst.msk [vmem:[#allocation2 + $0x8] sm:$0xff] %vm240, %v237
    %243 = vst.msk [vmem:[#allocation2 + $0x10] sm:$0xff] %vm240, %v238
    %244 = vst.msk [vmem:[#allocation2 + $0x18] sm:$0xff] %vm240, %v239
    // Predicated region
    $region26: #{tpu_custom_call.1} parent=1 // pred_check
      %p245 = pneg %p22
    $region27: #{tpu_custom_call.1} parent=1 // pred_check_branch
      %247 = sbr.rel (%p245) target = $region29
    $region28: #{tpu_custom_call.1} parent=1 // pred_region
      %v248 = vld [vmem:[%s4] sm:$0xf]
      %v249 = vld [vmem:[%s4 + $0x4] sm:$0xf]
      %v250 = vld [vmem:[%s4 + $0x8] sm:$0xf]
      %v251 = vld [vmem:[%s4 + $0xc] sm:$0xf]
      %v252 = vld [vmem:[#allocation2] sm:$0xff]
      %v253 = vld [vmem:[#allocation2 + $0x8] sm:$0xff]
      %v254 = vld [vmem:[#allocation2 + $0x10] sm:$0xff]
      %v255 = vld [vmem:[#allocation2 + $0x18] sm:$0xff]
      %v256 = vld [vmem:[%s3] sm:$0xff]
      %v257 = vld [vmem:[%s3 + $0x8] sm:$0xff]
      %v258 = vld [vmem:[%s3 + $0x10] sm:$0xff]
      %v259 = vld [vmem:[%s3 + $0x18] sm:$0xff]
      %261 = vset.pattern.permute.xlu0 0
      %262 = vperm.xlu0 %261, %v256
      %v263 = vpop.permute.xlu0 %262
      %266 = vset.pattern.permute.xlu0 0
      %267 = vperm.xlu0 %266, %v257
      %v268 = vpop.permute.xlu0 %267
      %271 = vset.pattern.permute.xlu0 0
      %272 = vperm.xlu0 %271, %v258
      %v273 = vpop.permute.xlu0 %272
      %276 = vset.pattern.permute.xlu0 0
      %277 = vperm.xlu0 %276, %v259
      %v278 = vpop.permute.xlu0 %277
      %v280 = vmul.f32 %v252, %v263
      %v281 = vmul.f32 %v253, %v268
      %v282 = vmul.f32 %v254, %v273
      %v283 = vmul.f32 %v255, %v278
      %v284 = vld [vmem:[%s0] sm:$0xf]
      %v285 = vld [vmem:[%s0 + $0x4] sm:$0xf]
      %v286 = vld [vmem:[%s0 + $0x8] sm:$0xf]
      %v287 = vld [vmem:[%s0 + $0xc] sm:$0xf]
      %v288 = vunpack.c.l.bf16 %v284
      %v289 = vunpack.c.l.bf16 %v285
      %v290 = vunpack.c.l.bf16 %v286
      %v291 = vunpack.c.l.bf16 %v287
      %296 = vrot.lane.b32.xlu0 %v280, 16
      %v297 = vpop.permute.xlu0 %296
      %298 = vrot.lane.b32.xlu0 %v281, 16
      %v299 = vpop.permute.xlu0 %298
      %300 = vrot.lane.b32.xlu0 %v282, 16
      %v301 = vpop.permute.xlu0 %300
      %302 = vrot.lane.b32.xlu0 %v283, 16
      %v303 = vpop.permute.xlu0 %302
      %v308 = vsel %vm240, %v288, %v297
      %v309 = vsel %vm240, %v289, %v299
      %v310 = vsel %vm240, %v290, %v301
      %v311 = vsel %vm240, %v291, %v303
      %v312 = vpack.c.bf16 %v309, %v308
      %v313 = vpack.c.bf16 %v311, %v310
      %v318 = vunpack.c.l.b16 %v248
      %v319 = vunpack.c.l.b16 %v249
      %v320 = vunpack.c.l.b16 %v250
      %v321 = vunpack.c.l.b16 %v251
      %v322 = vpack.c.b16 %v319, %v318
      %v323 = vpack.c.b16 %v321, %v320
      %vm326 = vcmask 261120
      %v328 = vsel %vm326, %v312, 0
      %v331 = vsel %vm326, %v313, 0
      %333 = vmatprep.subr.bf16.mxu0 0
      %334 = vmatpush1.bf16.msra.mxu0 0
      %335 = vmatprep.subr.bf16.mxu0 0
      %336 = vmatpush1.bf16.msra.mxu0 0
      %337 = vmatprep.subr.bf16.mxu0 0
      %338 = vmatpush1.bf16.msra.mxu0 0
      %339 = vmatprep.subr.bf16.mxu0 0
      %340 = vmatpush1.bf16.msra.mxu0 0
      %341 = vmatprep.subr.bf16.mxu0 0
      %342 = vmatpush1.bf16.msra.mxu0 0
      %343 = vmatprep.subr.bf16.mxu0 0
      %344 = vmatpush1.bf16.msra.mxu0 0
      %345 = vmatprep.subr.bf16.mxu0 0
      %346 = vmatpush1.bf16.msra.mxu0 %v323
      %347 = vmatprep.subr.bf16.mxu0 0
      %348 = vmatpush1.bf16.msra.mxu0 %v322
      %349 = vmatprep.subr.bf16.mxu0 0
      %350 = vmatpush2.bf16.msra.mxu0 0
      %351 = vmatprep.subr.bf16.mxu0 0
      %352 = vmatpush2.bf16.msra.mxu0 0
      %353 = vmatprep.subr.bf16.mxu0 0
      %354 = vmatpush2.bf16.msra.mxu0 0
      %355 = vmatprep.subr.bf16.mxu0 0
      %356 = vmatpush2.bf16.msra.mxu0 0
      %357 = vmatprep.subr.bf16.mxu0 0
      %358 = vmatpush2.bf16.msra.mxu0 0
      %359 = vmatprep.subr.bf16.mxu0 0
      %360 = vmatpush2.bf16.msra.mxu0 0
      %361 = vmatprep.subr.bf16.mxu0 0
      %362 = vmatpush2.bf16.msra.mxu0 0
      %363 = vmatprep.subr.bf16.mxu0 0
      %364 = vmatpush2.bf16.msra.mxu0 0
      %365 = vmatprep.mubr.bf16.mxu0 0
      %366 = vmatmul.mubr.bf16.gmra.mxu0 %v328
      %v367 = vpop.f32.mrf.mxu0
      %v368 = vadd.f32 0.0, %v367
      %v369 = vpop.f32.mrf.mxu0
      %v370 = vpop.f32.mrf.mxu0
      %v371 = vadd.f32 0.0, %v370
      %v372 = vpop.f32.mrf.mxu0
      %373 = vmatprep.mubr.bf16.mxu0 0
      %374 = vmatmul.mubr.bf16.gmra.mxu0 %v331
      %v375 = vpop.f32.mrf.mxu0
      %v376 = vadd.f32 0.0, %v375
      %v377 = vpop.f32.mrf.mxu0
      %v378 = vpop.f32.mrf.mxu0
      %v379 = vadd.f32 0.0, %v378
      %v380 = vpop.f32.mrf.mxu0
      %381 = vdwg.mxu0
      %v382 = vmax.f32 %v368, 0.0
      %v383 = vmax.f32 %v371, 0.0
      %v384 = vmax.f32 %v376, 0.0
      %v385 = vmax.f32 %v379, 0.0
      %386 = vst [vmem:[#allocation3] sm:$0xff] %v382
      %387 = vst [vmem:[#allocation3 + $0x8] sm:$0xff] %v383
      %388 = vst [vmem:[#allocation3 + $0x10] sm:$0xff] %v384
      %389 = vst [vmem:[#allocation3 + $0x18] sm:$0xff] %v385
    $region29: #{tpu_custom_call.1} parent=1 // pred_fallthru
      _
    // Predicated region
    $region30: #{tpu_custom_call.1} parent=1 // pred_check
      _
    $region31: #{tpu_custom_call.1} parent=1 // pred_check_branch
      %391 = sbr.rel (0) target = $region33
    $region32: #{tpu_custom_call.1} parent=1 // pred_region
      %s393 = ssub.s32 512, 512
      %394 = vsyncadd [#allocation4], %s393
      %s395 = sshll.u32 [#allocation3], 4
      %s396 = int_to_ptr.vmem [resolvable:$true] %s395
      %401 = dma.vmem_to_hbm [thread:$0]  %s396, 512, %s5, [#allocation4], 128, 128, 8
    $region33: #{tpu_custom_call.1} parent=1 // pred_fallthru
      _
    // Predicated region
    $region34: #{tpu_custom_call.1} parent=1 // pred_check
      _
    $region35: #{tpu_custom_call.1} parent=1 // pred_check_branch
      %403 = sbr.rel (0) target = $region37
    $region36: #{tpu_custom_call.1} parent=1 // pred_region
      %404 = dma.done [#allocation4], 512
    $region37: #{tpu_custom_call.1} parent=1 // pred_fallthru
      _
    %405 = vsyncpa [#allocation4], 1

</llo_original>
